<compile_context>
chip_gen: v5e
topology: v5e:2x2
jax: 0.10.0
libtpu: 0.0.40
codegen_flags: <defaults>
</compile_context>

<pallas_src>
import jax
import jax.numpy as jnp
from jax import lax
from jax.experimental import pallas as pl
from jax.experimental.pallas import tpu as pltpu


def _round_up(x, m):
    return ((x + m - 1) // m) * m


def center_loss_kernel(idx_ref, preds_ref, centers_ref, out_ref):
    """idx_ref:     (TB, 1)  int32  VMEM — matched center index per sample (-1 = pad).
    preds_ref:   (TB, D)  f32    VMEM — prediction tile.
    centers_ref: (N,  D)  f32    VMEM — full (padded) center table, grid-resident.
    out_ref:     (1, 1, D) f32   VMEM — per-tile, per-lane partial sum of squared diffs.
    """
    TB = preds_ref.shape[0]
    N = centers_ref.shape[0]

    idx = idx_ref[...]                                           # (TB, 1) int32
    iota = lax.broadcasted_iota(jnp.int32, (TB, N), 1)           # (TB, N)
    onehot = (iota == idx).astype(jnp.float32)                   # all-zero row when idx == -1
    # MXU gather: (TB, N) @ (N, D) -> (TB, D)
    gathered = jnp.dot(onehot, centers_ref[...],
                       preferred_element_type=jnp.float32)

    d = preds_ref[...] - gathered                                # (TB, D) full-width VPU
    # Per-lane partial sums (reduce over batch sublanes only); scaling happens
    # once in the wrapper.
    out_ref[0] = jnp.sum(d * d, axis=0, keepdims=True)           # (1, D)


def center_loss(batch_tensors, longitude, latitude, cluster_centers,
                table_lon, table_lat, *, tb=512):
    """Pure-JAX glue + Pallas hot path.

    batch_tensors: (B, D) f32
    longitude, latitude: (B,) f32 — batch_coords = list(zip(longitude, latitude))
    cluster_centers: (N, D) f32
    table_lon, table_lat: (N,) f32 — the center_table as parallel coord arrays
    """
    assert tb % 8 == 0
    batch_tensors = batch_tensors.astype(jnp.float32)
    cluster_centers = cluster_centers.astype(jnp.float32)
    B, D = batch_tensors.shape
    N = cluster_centers.shape[0]

    # Replaces `self.center_table.index(coord)` (exact-match list lookup).
    # TODO(synk): list.index() raises on a missing coord; argmax silently picks 0.
    match = (longitude[:, None] == table_lon[None, :]) & \
            (latitude[:, None] == table_lat[None, :])
    idx = jnp.argmax(match, axis=-1).astype(jnp.int32)           # (B,)

    # --- pad to TPU-friendly shapes (zero padding contributes 0 to the loss) ---
    TB = min(tb, _round_up(B, 8))            # batch tile (multiple of 8 sublanes)
    B_pad = _round_up(B, TB)
    D_pad = _round_up(D, 128)                # lane axis multiple of 128
    N_pad = _round_up(N, 128)                # MXU-friendly contraction dim

    preds_pad = jnp.zeros((B_pad, D_pad), jnp.float32).at[:B, :D].set(batch_tensors)
    centers_pad = jnp.zeros((N_pad, D_pad), jnp.float32).at[:N, :D].set(cluster_centers)
    idx_pad = jnp.full((B_pad, 1), -1, jnp.int32).at[:B, 0].set(idx)

    num_tiles = B_pad // TB

    partials = pl.pallas_call(
        center_loss_kernel,
        out_shape=jax.ShapeDtypeStruct((num_tiles, 1, D_pad), jnp.float32),
        grid=(num_tiles,),
        in_specs=[
            pl.BlockSpec((TB, 1), lambda i: (i, 0)),             # idx tile
            pl.BlockSpec((TB, D_pad), lambda i: (i, 0)),         # preds tile (double-buffered)
            pl.BlockSpec((N_pad, D_pad), lambda i: (0, 0)),      # centers: VMEM-resident
        ],
        out_specs=pl.BlockSpec((1, 1, D_pad), lambda i: (i, 0, 0)),
        compiler_params=pltpu.CompilerParams(
            dimension_semantics=("parallel",),                   # independent per-tile partials
        ),
    )(idx_pad, preds_pad, centers_pad)

    # One final reduction + one scale: sum of squared diffs / (B * D).
    return jnp.sum(partials) / (B * D)


def _reference(batch_tensors, longitude, latitude, cluster_centers,
               table_lon, table_lat):
    """Pure-JAX reference mirroring the PyTorch forward."""
    match = (longitude[:, None] == table_lon[None, :]) & \
            (latitude[:, None] == table_lat[None, :])
    idx = jnp.argmax(match, axis=-1)
    gathered = cluster_centers[idx]                              # (B, D)
    per_sample_mse = jnp.mean((batch_tensors - gathered) ** 2, axis=-1)
    return jnp.mean(per_sample_mse)


if __name__ == "__main__":
    # Small synthetic shapes consistent with the module (original: n_centers=856, dim=512).
    N_CENTERS = 16
    DIM = 128
    BATCH = 4

    key = jax.random.PRNGKey(0)
    k_centers, k_preds, k_pick = jax.random.split(key, 3)

    # __init__: cluster_centers = torch.rand(n_centers, dim) * n_centers / dim
    cluster_centers = (jax.random.uniform(k_centers, (N_CENTERS, DIM),
                                          dtype=jnp.float32)
                       * N_CENTERS / DIM)

    # Deterministic center_table: one (lon, lat) coord per center.
    table_lon = jnp.arange(N_CENTERS, dtype=jnp.float32) * 2.5
    table_lat = jnp.arange(N_CENTERS, dtype=jnp.float32) * -1.25 + 7.0

    # Batch predictions and their coords (picked from the table so .index() succeeds).
    batch_tensors = jax.random.normal(k_preds, (BATCH, DIM), dtype=jnp.float32)
    picked = jax.random.randint(k_pick, (BATCH,), 0, N_CENTERS)
    longitude = table_lon[picked]
    latitude = table_lat[picked]

    loss = center_loss(batch_tensors, longitude, latitude, cluster_centers,
                       table_lon, table_lat)
    loss = jax.block_until_ready(loss)

    ref = _reference(batch_tensors, longitude, latitude, cluster_centers,
                     table_lon, table_lat)
    assert jnp.allclose(loss, ref, rtol=1e-5, atol=1e-5), (loss, ref)

    print("KERNEL_OK")
</pallas_src>

<mosaic_0001>
module attributes {stable_mosaic.version = 11 : i64} {
  func.func @center_loss_kernel(%arg0: i32, %arg1: memref<8x1xi32, #tpu.memory_space<vmem>>, %arg2: memref<8x128xf32, #tpu.memory_space<vmem>>, %arg3: memref<128x128xf32, #tpu.memory_space<vmem>>, %arg4: memref<1x1x128xf32, #tpu.memory_space<vmem>>) attributes {dimension_semantics = [#tpu.dimension_semantics<parallel>], iteration_bounds = array<i64: 1>, scalar_prefetch = 0 : i64, scratch_operands = 0 : i64, tpu.core_type = #tpu.core_type<tc>, window_params = [{transform_indices = @transform_0, window_bounds = array<i64: 8, 1>}, {transform_indices = @transform_1, window_bounds = array<i64: 8, 128>}, {pipeline_mode = #tpu.pipeline_mode<synchronous>, transform_indices = @transform_2, window_bounds = array<i64: 128, 128>}, {transform_indices = @transform_3, window_bounds = array<i64: 1, 1, 128>}]} {
    %c0 = arith.constant 0 : index
    %c0_0 = arith.constant 0 : index
    %0 = vector.load %arg1[%c0, %c0_0] : memref<8x1xi32, #tpu.memory_space<vmem>>, vector<8x1xi32>
    %1 = tpu.iota {dimensions = array<i32: 1>} : vector<8x128xi32>
    %2 = vector.broadcast %0 : vector<8x1xi32> to vector<8x128xi32>
    %3 = arith.cmpi eq, %1, %2 : vector<8x128xi32>
    %4 = arith.extui %3 : vector<8x128xi1> to vector<8x128xi32>
    %5 = arith.sitofp %4 : vector<8x128xi32> to vector<8x128xf32>
    %c0_1 = arith.constant 0 : index
    %c0_2 = arith.constant 0 : index
    %6 = vector.load %arg3[%c0_1, %c0_2] : memref<128x128xf32, #tpu.memory_space<vmem>>, vector<128x128xf32>
    %cst = arith.constant dense<0.000000e+00> : vector<8x128xf32>
    %7 = tpu.matmul %5, %6, %cst {dimension_numbers = #tpu.dot_dimension_numbers<[1], [0], [0], [1], [0, 0, 1, 1], [], []>} : vector<8x128xf32>, vector<128x128xf32>, vector<8x128xf32> -> vector<8x128xf32>
    %c0_3 = arith.constant 0 : index
    %c0_4 = arith.constant 0 : index
    %8 = vector.load %arg2[%c0_3, %c0_4] : memref<8x128xf32, #tpu.memory_space<vmem>>, vector<8x128xf32>
    %9 = arith.subf %8, %7 : vector<8x128xf32>
    %10 = arith.mulf %9, %9 : vector<8x128xf32>
    %cst_5 = arith.constant dense<0.000000e+00> : vector<128xf32>
    %11 = vector.multi_reduction <add>, %10, %cst_5 [0] : vector<8x128xf32> to vector<128xf32>
    %12 = vector.shape_cast %11 : vector<128xf32> to vector<1x128xf32>
    %c0_6 = arith.constant 0 : index
    %c0_7 = arith.constant 0 : index
    %c0_8 = arith.constant 0 : index
    %13 = vector.load %arg4[%c0_6, %c0_7, %c0_8] : memref<1x1x128xf32, #tpu.memory_space<vmem>>, vector<1x1x128xf32>
    %14 = vector.shape_cast %13 : vector<1x1x128xf32> to vector<1x128xf32>
    %15 = vector.shape_cast %12 : vector<1x128xf32> to vector<1x1x128xf32>
    tpu.vector_store %arg4[%c0_6, %c0_7, %c0_8], %15 {strides = array<i32>} : memref<1x1x128xf32, #tpu.memory_space<vmem>>, vector<1x1x128xf32>,
    return
  }
  func.func @transform_0(%arg0: i32) -> (i32, i32) {
    %c0_i32 = arith.constant 0 : i32
    %c0_i32_0 = arith.constant 0 : i32
    return %arg0, %c0_i32 : i32, i32
  }
  func.func @transform_1(%arg0: i32) -> (i32, i32) {
    %c0_i32 = arith.constant 0 : i32
    %c0_i32_0 = arith.constant 0 : i32
    return %arg0, %c0_i32 : i32, i32
  }
  func.func @transform_2(%arg0: i32) -> (i32, i32) {
    %c0_i32 = arith.constant 0 : i32
    %c0_i32_0 = arith.constant 0 : i32
    %c0_i32_1 = arith.constant 0 : i32
    return %c0_i32, %c0_i32_0 : i32, i32
  }
  func.func @transform_3(%arg0: i32) -> (i32, i32, i32) {
    %c0_i32 = arith.constant 0 : i32
    %c0_i32_0 = arith.constant 0 : i32
    %c0_i32_1 = arith.constant 0 : i32
    return %arg0, %c0_i32, %c0_i32_0 : i32, i32, i32
  }
}

</mosaic_0001>

<llo_original>
// kernel: tpu_custom_call.1
$region0: #{tpu_custom_call.1}
  #allocation0 [shape = 'u32[]', space=smem, size = 0x4, offset = 0x4, fixed_abs, tag = 'smem constant byte address 0x4 - core index']
  #allocation1 [shape = 'u32[72,128]{1,0:T(1,128)}', space=vmem, size = 0x9000, scoped, tag = 'internal scratch']
  %s0 = inlined_call_operand.vmem [shape: s32[8,1], index: 0, kind: input, shape index: {}]
  %s1 = inlined_call_operand.vmem [shape: f32[8,128], index: 1, kind: input, shape index: {}]
  %s2 = inlined_call_operand.hbm [shape: f32[128,128], index: 2, kind: input, shape index: {}]
  %s3 = inlined_call_operand.hbm [shape: f32[1,1,128], index: 3, kind: output, shape index: {}]
  %s4 = sld [smem:[#allocation0]]
  $region26: #{tpu_custom_call.1} parent=0
    _
  %s6 = ssub.s32 1, %s4
  %s7 = scalar_select 0, %s6, %s4
  $region1: #{tpu_custom_call.1} parent=0
    #allocation2 [shape = 'u8[65536]{0}', space=vmem, size = 0x10000, scoped, tag = 'input window, operand 2, single buffered']
    #allocation3 [shape = 's32[1]{0}', space=sflag, size = 0x4, scoped, tag = 'scoped memory for tpu_custom_call.1']
    #allocation4 [shape = 's32[1]{0}', space=sflag, size = 0x4, scoped, tag = 'scoped memory for tpu_custom_call.1']
    #allocation5 [shape = 'u8[512]{0}', space=vmem, size = 0x400, scoped, tag = 'output window, operand 0, single buffered']
    %8 = vsyncpa [#allocation3], 0
    %9 = vsyncpa [#allocation4], 0
    // Predicated region
    $region2: #{tpu_custom_call.1} parent=1 // pred_check
      _
    $region3: #{tpu_custom_call.1} parent=1 // pred_check_branch
      %11 = sbr.rel (0) target = $region5
    $region4: #{tpu_custom_call.1} parent=1 // pred_region
      _
    $region5: #{tpu_custom_call.1} parent=1 // pred_fallthru
      _
    // Predicated region
    $region6: #{tpu_custom_call.1} parent=1 // pred_check
      _
    $region7: #{tpu_custom_call.1} parent=1 // pred_check_branch
      %13 = sbr.rel (0) target = $region9
    $region8: #{tpu_custom_call.1} parent=1 // pred_region
      _
    $region9: #{tpu_custom_call.1} parent=1 // pred_fallthru
      _
    // Predicated region
    $region10: #{tpu_custom_call.1} parent=1 // pred_check
      _
    $region11: #{tpu_custom_call.1} parent=1 // pred_check_branch
      %15 = sbr.rel (0) target = $region13
    $region12: #{tpu_custom_call.1} parent=1 // pred_region
      %17 = vsyncadd [#allocation3], 0
      %s18 = sshll.u32 %s2, 4
      %s19 = int_to_ptr.hbm [resolvable:$true] %s18
      %s20 = sshll.u32 [#allocation2], 4
      %s21 = int_to_ptr.vmem [resolvable:$true] %s20
      %26 = dma.hbm_to_vmem [thread:$0]  %s19, 2048, %s21, [#allocation3], 128, 128, 8
    $region13: #{tpu_custom_call.1} parent=1 // pred_fallthru
      _
    // Predicated region
    $region14: #{tpu_custom_call.1} parent=1 // pred_check
      _
    $region15: #{tpu_custom_call.1} parent=1 // pred_check_branch
      %28 = sbr.rel (0) target = $region17
    $region16: #{tpu_custom_call.1} parent=1 // pred_region
      %30 = dma.done [#allocation3], 2048
    $region17: #{tpu_custom_call.1} parent=1 // pred_fallthru
      _
    %v31 = vld [vmem:[%s0] sm:$0xff]
    %v32 = vlaneseq
    %v33 = vand.u32 %v32, 127
    %34 = vset.pattern.permute.xlu0 0
    %35 = vperm.xlu0 %34, %v31
    %v36 = vpop.permute.xlu0 %35
    %vm37 = vcmp.eq.s32.totalorder %v33, %v36
    %v38 = vsel %vm37, 1, 0
    %v39 = vcvt.s32.f32 %v38
    %v40 = vld [vmem:[#allocation2] sm:$0xff]
    %v41 = vld [vmem:[#allocation2 + $0x8] sm:$0xff]
    %v42 = vld [vmem:[#allocation2 + $0x10] sm:$0xff]
    %v43 = vld [vmem:[#allocation2 + $0x18] sm:$0xff]
    %v44 = vld [vmem:[#allocation2 + $0x20] sm:$0xff]
    %v45 = vld [vmem:[#allocation2 + $0x28] sm:$0xff]
    %v46 = vld [vmem:[#allocation2 + $0x30] sm:$0xff]
    %v47 = vld [vmem:[#allocation2 + $0x38] sm:$0xff]
    %v48 = vld [vmem:[#allocation2 + $0x40] sm:$0xff]
    %v49 = vld [vmem:[#allocation2 + $0x48] sm:$0xff]
    %v50 = vld [vmem:[#allocation2 + $0x50] sm:$0xff]
    %v51 = vld [vmem:[#allocation2 + $0x58] sm:$0xff]
    %v52 = vld [vmem:[#allocation2 + $0x60] sm:$0xff]
    %v53 = vld [vmem:[#allocation2 + $0x68] sm:$0xff]
    %v54 = vld [vmem:[#allocation2 + $0x70] sm:$0xff]
    %v55 = vld [vmem:[#allocation2 + $0x78] sm:$0xff]
    %56 = vmatpush.msra.mxu0 %v55
    %57 = vmatpush.msra.mxu0 %v54
    %58 = vmatpush.msra.mxu0 %v53
    %59 = vmatpush.msra.mxu0 %v52
    %60 = vmatpush.msra.mxu0 %v51
    %61 = vmatpush.msra.mxu0 %v50
    %62 = vmatpush.msra.mxu0 %v49
    %63 = vmatpush.msra.mxu0 %v48
    %64 = vmatpush.msra.mxu0 %v47
    %65 = vmatpush.msra.mxu0 %v46
    %66 = vmatpush.msra.mxu0 %v45
    %67 = vmatpush.msra.mxu0 %v44
    %68 = vmatpush.msra.mxu0 %v43
    %69 = vmatpush.msra.mxu0 %v42
    %70 = vmatpush.msra.mxu0 %v41
    %71 = vmatpush.msra.mxu0 %v40
    %72 = vmatmul.f32.gmra.mxu0 %v39
    %v73 = vpop.f32.mrf.mxu0
    %v74 = vadd.f32 0.0, %v73
    %75 = vdwg.mxu0
    %v76 = vld [vmem:[%s1] sm:$0xff]
    %v77 = vsub.f32 %v76, %v74
    %v78 = vmul.f32 %v77, %v77
    %v79 = vrot.slane %v78, 4
    %v80 = vadd.f32 %v78, %v79
    %v81 = vrot.slane %v80, 2
    %v82 = vadd.f32 %v80, %v81
    %v83 = vrot.slane %v82, 1
    %v84 = vadd.f32 %v82, %v83
    %85 = vst [vmem:[#allocation5] sm:$0x1] %v84
    // Predicated region
    $region18: #{tpu_custom_call.1} parent=1 // pred_check
      _
    $region19: #{tpu_custom_call.1} parent=1 // pred_check_branch
      %87 = sbr.rel (0) target = $region21
    $region20: #{tpu_custom_call.1} parent=1 // pred_region
      %89 = vsyncadd [#allocation4], 0
      %s91 = sshll.u32 [#allocation5], 4
      %s92 = int_to_ptr.vmem [resolvable:$true] %s91
      %s93 = sshll.u32 %s3, 4
      %s94 = int_to_ptr.hbm [resolvable:$true] %s93
      %96 = dma.vmem_to_hbm [thread:$0]  %s92, 16, %s94, [#allocation4]
    $region21: #{tpu_custom_call.1} parent=1 // pred_fallthru
      _
    // Predicated region
    $region22: #{tpu_custom_call.1} parent=1 // pred_check
      _
    $region23: #{tpu_custom_call.1} parent=1 // pred_check_branch
      %98 = sbr.rel (0) target = $region25
    $region24: #{tpu_custom_call.1} parent=1 // pred_region
      %100 = dma.done [#allocation4], 16
    $region25: #{tpu_custom_call.1} parent=1 // pred_fallthru
      _
    %101 = vsyncpa [#allocation3], 1
    %102 = vsyncpa [#allocation4], 1

</llo_original>
